<compile_context>
chip_gen: v5e
topology: v5e:2x2
jax: 0.10.0
libtpu: 0.0.40
codegen_flags: <defaults>
</compile_context>

<pallas_src>
import functools

import jax
import jax.numpy as jnp
from jax.experimental import pallas as pl
from jax.experimental.pallas import tpu as pltpu

LANE = 128
SUBLANE = 8


def _round_up(x, m):
    return ((x + m - 1) // m) * m


def _row_tile(n_rows, tm):
    """Row tile: big (kernels are HBM-bound) but keep >= 2 grid steps so the
    'parallel' grid axis can shard rows across v7x's two TensorCores."""
    t = min(_round_up(tm, SUBLANE), _round_up(pl.cdiv(n_rows, 2), SUBLANE))
    return max(SUBLANE, t)


# ----------------------------------------------------------------------------
# Pallas kernel 1: fused row-tiled dense MLP  ((x @ W + b) [-> ReLU])* [+ res]
# ----------------------------------------------------------------------------
def _make_mlp_kernel(relu_flags, has_residual):
    n_layers = len(relu_flags)

    def kernel(*refs):
        x_ref = refs[0]
        res_ref = refs[1] if has_residual else None
        out_ref = refs[-1]
        params = refs[(2 if has_residual else 1):-1]
        assert len(params) == 2 * n_layers

        h = x_ref[...]                                 # f32 tile
        for l in range(n_layers):
            w = params[2 * l][...]                     # bf16 (Cin_l, Cout_l)
            b = params[2 * l + 1][...]                 # f32  (1, Cout_l)
            acc = jnp.dot(h.astype(jnp.bfloat16), w,   # in-kernel bf16 cast
                          preferred_element_type=jnp.float32) + b
            h = jnp.maximum(acc, 0.0) if relu_flags[l] else acc
        if has_residual:
            h = h + res_ref[...]
        out_ref[...] = h.astype(out_ref.dtype)

    return kernel


def _dense_ref_math(x, layers, residual=None):
    """Plain-JAX math identical (same bf16 casts) to the Pallas MLP kernel."""
    h = jnp.asarray(x, jnp.float32)
    for (w, b, relu) in layers:
        h = jnp.dot(h.astype(jnp.bfloat16), jnp.asarray(w, jnp.bfloat16),
                    preferred_element_type=jnp.float32) + \
            jnp.asarray(b, jnp.float32).reshape(1, -1)
        if relu:
            h = jnp.maximum(h, 0.0)
    if residual is not None:
        h = h + jnp.asarray(residual, jnp.float32)
    return h


def fused_dense_rows(x, layers, residual=None, *, tm=1024,
                     min_rows_for_pallas=32, use_pallas=True):
    """Row-tiled fused MLP.  x: (R, Cin) f32.  layers: list of
    (W (Cin_l, Cout_l), b (1, Cout_l), relu) with BatchNorm already folded in.
    residual: optional (R, Cout_last) added after the last layer."""
    x = jnp.asarray(x, jnp.float32)
    R, Cin = x.shape
    if residual is not None:
        residual = jnp.asarray(residual, jnp.float32)

    if (not use_pallas) or R < min_rows_for_pallas:
        return _dense_ref_math(x, layers, residual)   # tiny-R: skip kernel

    relu_flags = tuple(bool(l[2]) for l in layers)
    has_res = residual is not None
    ws = [jnp.asarray(w, jnp.bfloat16) for (w, _, _) in layers]
    bs = [jnp.asarray(b, jnp.float32).reshape(1, -1) for (_, b, _) in layers]
    c_out = ws[-1].shape[1]                            # exact width, no lane pad

    tm_eff = _row_tile(R, tm)
    Rp = _round_up(R, tm_eff)
    if Rp != R:                                        # bounded tail pad only
        x = jnp.pad(x, ((0, Rp - R), (0, 0)))
        if has_res:
            residual = jnp.pad(residual, ((0, Rp - R), (0, 0)))

    inputs = [x]
    in_specs = [pl.BlockSpec((tm_eff, Cin), lambda i: (i, 0))]
    if has_res:
        inputs.append(residual)
        in_specs.append(pl.BlockSpec((tm_eff, c_out), lambda i: (i, 0)))
    for w, b in zip(ws, bs):
        inputs.extend([w, b])
        in_specs.append(pl.BlockSpec(w.shape, lambda i: (0, 0)))
        in_specs.append(pl.BlockSpec(b.shape, lambda i: (0, 0)))

    out = pl.pallas_call(
        _make_mlp_kernel(relu_flags, has_res),
        out_shape=jax.ShapeDtypeStruct((Rp, c_out), jnp.float32),
        grid_spec=pltpu.PrefetchScalarGridSpec(
            num_scalar_prefetch=0,
            grid=(Rp // tm_eff,),
            in_specs=in_specs,
            out_specs=pl.BlockSpec((tm_eff, c_out), lambda i: (i, 0)),
        ),
        compiler_params=pltpu.CompilerParams(
            dimension_semantics=("parallel",)),
    )(*inputs)
    return out if Rp == R else out[:R]


# ----------------------------------------------------------------------------
# Pallas kernel 2: channel_shrinker score kernel
#   score[i, k] = relu(g1[knn[i,k]] + g2[i]) . w2 + b2   -> (m, nsample)
# ----------------------------------------------------------------------------
def _score_kernel(g1g_ref, g2_ref, w2_ref, b2_ref, out_ref):
    h = jnp.maximum(g1g_ref[...] + g2_ref[...], 0.0)     # (tm, ns, C)
    out_ref[...] = jnp.sum(h * w2_ref[...], axis=-1) + b2_ref[0, 0]


def knn_scores(g1, g2, knn_idx, w2, b2, *, tm=256, min_rows_for_pallas=32,
               use_pallas=True):
    m, ns = knn_idx.shape
    C = g1.shape[1]
    g1 = jnp.asarray(g1, jnp.float32)
    g2 = jnp.asarray(g2, jnp.float32)
    w2_row = jnp.asarray(w2, jnp.float32).reshape(1, 1, C)
    b2_s = jnp.asarray(b2, jnp.float32).reshape(1, 1)

    # TODO(synk): gather g1 rows inside the kernel via scalar-prefetched
    # knn_idx (SMEM) to avoid this (m, nsample, C) HBM materialization.
    g1g = jnp.take(g1, knn_idx, axis=0)                   # (m, ns, C)
    g2_3d = g2.reshape(m, 1, C)

    if (not use_pallas) or m < min_rows_for_pallas:
        h = jnp.maximum(g1g + g2_3d, 0.0)
        return jnp.sum(h * w2_row, axis=-1) + b2_s[0, 0]

    tm_eff = _row_tile(m, tm)
    Mp = _round_up(m, tm_eff)
    if Mp != m:
        g1g = jnp.pad(g1g, ((0, Mp - m), (0, 0), (0, 0)))
        g2_3d = jnp.pad(g2_3d, ((0, Mp - m), (0, 0), (0, 0)))

    out = pl.pallas_call(
        _score_kernel,
        out_shape=jax.ShapeDtypeStruct((Mp, ns), jnp.float32),
        grid_spec=pltpu.PrefetchScalarGridSpec(
            num_scalar_prefetch=0,
            grid=(Mp // tm_eff,),
            in_specs=[
                pl.BlockSpec((tm_eff, ns, C), lambda i: (i, 0, 0)),
                pl.BlockSpec((tm_eff, 1, C), lambda i: (i, 0, 0)),
                pl.BlockSpec((1, 1, C), lambda i: (0, 0, 0)),
                pl.BlockSpec(memory_space=pltpu.MemorySpace.SMEM),
            ],
            out_specs=pl.BlockSpec((tm_eff, ns), lambda i: (i, 0)),
        ),
        compiler_params=pltpu.CompilerParams(
            dimension_semantics=("parallel",)),
    )(g1g, g2_3d, w2_row, b2_s)
    return out if Mp == m else out[:m]


# ----------------------------------------------------------------------------
# Plain-JAX glue: segment ids, kNN (pointops.knnquery equivalent)
# ----------------------------------------------------------------------------
def _segment_ids(offset, n):
    return jnp.searchsorted(offset, jnp.arange(n), side="right")


def knn_query(nsample, p_src, p_query, o_src, o_query):
    """Indices of the nsample nearest source points per query, restricted to
    the query's own point-cloud segment (pointops.knnquery semantics)."""
    # TODO(synk): tile this (query tiles x source tiles with a running top-k)
    # for production point-cloud sizes; the dense matrix is O(n^2) HBM.
    n_src, n_q = p_src.shape[0], p_query.shape[0]
    seg_s = _segment_ids(o_src, n_src)
    seg_q = _segment_ids(o_query, n_q)
    d2 = jnp.sum((p_query[:, None, :] - p_src[None, :, :]) ** 2, axis=-1)
    d2 = jnp.where(seg_q[:, None] == seg_s[None, :], d2, jnp.inf)
    neg_d, idx = jax.lax.top_k(-d2, nsample)               # (n_q, nsample)
    # segments smaller than nsample: repeat the nearest valid neighbor
    idx = jnp.where(jnp.isfinite(neg_d), idx, idx[:, :1])
    return idx


# ----------------------------------------------------------------------------
# BN (eval) folding and deterministic parameter construction
# ----------------------------------------------------------------------------
def _fold_bn(w, b, gamma, beta, mean, var, eps=1e-5):
    scale = gamma / jnp.sqrt(var + eps)
    w_f = w * scale[None, :]
    b_f = (b - mean) * scale + beta
    return w_f.astype(jnp.float32), b_f.reshape(1, -1).astype(jnp.float32)


def init_params(key, in_planes, out_planes):
    def dense(k, cin, cout):
        return jax.random.normal(k, (cin, cout), jnp.float32) / jnp.sqrt(cin)

    def bn(k, c):
        k1, k2, k3, k4 = jax.random.split(k, 4)
        return (jax.random.uniform(k1, (c,), jnp.float32, 0.5, 1.5),
                jax.random.uniform(k2, (c,), jnp.float32, -0.1, 0.1),
                jax.random.uniform(k3, (c,), jnp.float32, -0.1, 0.1),
                jax.random.uniform(k4, (c,), jnp.float32, 0.5, 1.5))

    p = {}
    if out_planes is None:
        k = jax.random.split(key, 4)
        w1f, b1f = _fold_bn(dense(k[0], 2 * in_planes, in_planes),
                            jnp.zeros((in_planes,)), *bn(k[1], in_planes))
        p["linear1"] = [(w1f, b1f, True)]
        w2 = dense(k[2], in_planes, in_planes)
        b2 = jax.random.uniform(k[3], (in_planes,), jnp.float32, -0.1, 0.1)
        p["linear2"] = [(w2, b2.reshape(1, -1), True)]
    else:
        k = jax.random.split(key, 8)
        w1f, b1f = _fold_bn(dense(k[0], out_planes, out_planes),
                            jnp.zeros((out_planes,)), *bn(k[1], out_planes))
        p["linear1"] = [(w1f, b1f, True)]
        w2f, b2f = _fold_bn(dense(k[2], in_planes, out_planes),
                            jnp.zeros((out_planes,)), *bn(k[3], out_planes))
        p["linear2"] = [(w2f, b2f, True)]
        waf, baf = _fold_bn(dense(k[4], in_planes + 3, in_planes),
                            jnp.zeros((in_planes,)), *bn(k[5], in_planes))
        wb = dense(k[6], in_planes, 1)
        bb = jax.random.uniform(k[7], (1,), jnp.float32, -0.1, 0.1)
        p["channel_shrinker"] = [(waf, baf, True), (wb, bb.reshape(1, -1), False)]
    return p


# ----------------------------------------------------------------------------
# SymmetricTransitionUpBlock.forward (Pallas path)
# ----------------------------------------------------------------------------
def symmetric_transition_up_forward(params, pxo1, pxo2=None, *, nsample,
                                    use_pallas=True, tm=1024):
    dense = functools.partial(fused_dense_rows, tm=tm, use_pallas=use_pallas)

    if pxo2 is None:
        _, x, o = pxo1
        x = jnp.asarray(x, jnp.float32)
        n, n_seg = x.shape[0], o.shape[0]
        seg = _segment_ids(o, n)
        counts = (o - jnp.concatenate([jnp.zeros((1,), o.dtype), o[:-1]])
                  ).astype(jnp.float32)
        counts = jnp.maximum(counts, 1.0)                  # empty-segment guard
        seg_mean = jax.ops.segment_sum(x, seg, num_segments=n_seg) / counts[:, None]
        h = dense(seg_mean, params["linear2"])             # tiny R -> JAX path
        x_cat = jnp.concatenate([x, h[seg]], axis=1)       # (n, 2C)
        return dense(x_cat, params["linear1"])             # (n, C)

    p1, x1, o1 = pxo1
    p2, x2, o2 = pxo2
    p1 = jnp.asarray(p1, jnp.float32); x1 = jnp.asarray(x1, jnp.float32)
    p2 = jnp.asarray(p2, jnp.float32); x2 = jnp.asarray(x2, jnp.float32)
    n1, m = p1.shape[0], p2.shape[0]

    knn_idx = knn_query(nsample, p1, p2, o1, o2)           # (m, ns)
    idx_flat = knn_idx.reshape(-1)                         # (m*ns,)

    # channel_shrinker, algebraically decomposed (no (m*ns, C+3) HBM stream)
    (w1f, b1f, _), (w2, b2, _) = params["channel_shrinker"]
    w1f_p, w1f_x = w1f[:3], w1f[3:]                        # rows for p_r / x2
    g1 = dense(p1, [(w1f_p, jnp.zeros((1, w1f_p.shape[1]), jnp.float32), False)])
    g2 = dense(jnp.concatenate([x2, p2], axis=1),
               [(jnp.concatenate([w1f_x, -w1f_p], axis=0), b1f, False)])
    scores = knn_scores(g1, g2, knn_idx, w2, b2, use_pallas=use_pallas)  # (m, ns)
    scores_flat = scores.reshape(-1)

    # scatter_softmax over the target p1 index.
    # TODO(synk): data-dependent scatter left to XLA segment ops.
    seg_max = jax.ops.segment_max(scores_flat, idx_flat, num_segments=n1)
    seg_max = jnp.where(jnp.isfinite(seg_max), seg_max, 0.0)
    e = jnp.exp(scores_flat - seg_max[idx_flat])
    denom = jax.ops.segment_sum(e, idx_flat, num_segments=n1)
    prob = e / denom[idx_flat]                             # (m*ns,)

    v = dense(x2, params["linear2"])                       # (m, out)
    # TODO(synk): fuse the prob-weighting + segment_sum into a sorted-scatter
    # Pallas kernel to avoid the (m*nsample, out) inflation; left to XLA.
    weighted = (v[:, None, :] * prob.reshape(m, nsample, 1)
                ).reshape(m * nsample, -1)
    up_x2 = jax.ops.segment_sum(weighted, idx_flat, num_segments=n1)

    # linear1(x1) + up_x2, residual add fused inside the Pallas kernel
    return dense(x1, params["linear1"], residual=up_x2)


# ----------------------------------------------------------------------------
# Pure-f32 reference of the original PyTorch forward (semantic anchor)
# ----------------------------------------------------------------------------
def forward_fp32_reference(params, pxo1, pxo2=None, *, nsample):
    def apply(layers, x, residual=None):
        h = jnp.asarray(x, jnp.float32)
        for (w, b, relu) in layers:
            h = h @ jnp.asarray(w, jnp.float32) + jnp.asarray(b, jnp.float32).reshape(1, -1)
            if relu:
                h = jnp.maximum(h, 0.0)
        if residual is not None:
            h = h + residual
        return h

    if pxo2 is None:
        _, x, o = pxo1
        x = jnp.asarray(x, jnp.float32)
        n, n_seg = x.shape[0], o.shape[0]
        seg = _segment_ids(o, n)
        counts = (o - jnp.concatenate([jnp.zeros((1,), o.dtype), o[:-1]])
                  ).astype(jnp.float32)
        counts = jnp.maximum(counts, 1.0)
        seg_mean = jax.ops.segment_sum(x, seg, num_segments=n_seg) / counts[:, None]
        h = apply(params["linear2"], seg_mean)
        x_cat = jnp.concatenate([x, h[seg]], axis=1)
        return apply(params["linear1"], x_cat)

    p1, x1, o1 = pxo1
    p2, x2, o2 = pxo2
    p1 = jnp.asarray(p1, jnp.float32); x1 = jnp.asarray(x1, jnp.float32)
    p2 = jnp.asarray(p2, jnp.float32); x2 = jnp.asarray(x2, jnp.float32)
    n1, m = p1.shape[0], p2.shape[0]
    knn_idx = knn_query(nsample, p1, p2, o1, o2)
    idx_flat = knn_idx.reshape(-1)
    p_r = p1[idx_flat].reshape(m, nsample, 3) - p2[:, None, :]
    x2_rep = jnp.broadcast_to(x2[:, None, :], (m, nsample, x2.shape[1]))
    x2_knn = jnp.concatenate([p_r, x2_rep], axis=-1).reshape(m * nsample, -1)
    sc = apply(params["channel_shrinker"], x2_knn)[:, 0]
    seg_max = jax.ops.segment_max(sc, idx_flat, num_segments=n1)
    e = jnp.exp(sc - seg_max[idx_flat])
    denom = jax.ops.segment_sum(e, idx_flat, num_segments=n1)
    prob = e / denom[idx_flat]
    v = apply(params["linear2"], x2)
    weighted = (v[:, None, :] * prob.reshape(m, nsample, 1)).reshape(m * nsample, -1)
    up_x2 = jax.ops.segment_sum(weighted, idx_flat, num_segments=n1)
    return apply(params["linear1"], x1) + up_x2


# ----------------------------------------------------------------------------
# Demo + correctness checks
# ----------------------------------------------------------------------------
if __name__ == "__main__":
    key = jax.random.PRNGKey(0)
    in_planes, out_planes, nsample = 32, 64, 16
    n1_per, m_per, n_seg = 96, 24, 2
    N1, M = n1_per * n_seg, m_per * n_seg

    ks = jax.random.split(key, 8)
    p1 = jax.random.normal(ks[0], (N1, 3), jnp.float32)
    x1 = jax.random.normal(ks[1], (N1, out_planes), jnp.float32)
    o1 = jnp.array([n1_per, N1], jnp.int32)
    p2 = jax.random.normal(ks[2], (M, 3), jnp.float32)
    x2 = jax.random.normal(ks[3], (M, in_planes), jnp.float32)
    o2 = jnp.array([m_per, M], jnp.int32)

    # --- main branch: pxo2 is not None (upsampling path) ---
    params_up = init_params(ks[4], in_planes, out_planes)
    y = symmetric_transition_up_forward(params_up, (p1, x1, o1), (p2, x2, o2),
                                        nsample=nsample)
    jax.block_until_ready(y)
    assert y.shape == (N1, out_planes)
    # strict: Pallas kernels vs identical (same-cast) plain-JAX math
    y_same = symmetric_transition_up_forward(params_up, (p1, x1, o1),
                                             (p2, x2, o2), nsample=nsample,
                                             use_pallas=False)
    assert jnp.allclose(y, y_same, atol=2e-3, rtol=2e-3), \
        float(jnp.max(jnp.abs(y - y_same)))
    # loose: vs pure-f32 PyTorch-semantics reference (bf16 MXU rounding only)
    y_f32 = forward_fp32_reference(params_up, (p1, x1, o1), (p2, x2, o2),
                                   nsample=nsample)
    assert jnp.allclose(y, y_f32, atol=1e-1, rtol=1e-1), \
        float(jnp.max(jnp.abs(y - y_f32)))

    # --- pxo2 is None branch (out_planes=None configuration) ---
    params_none = init_params(ks[5], in_planes, None)
    xa = jax.random.normal(ks[6], (N1, in_planes), jnp.float32)
    y2 = symmetric_transition_up_forward(params_none, (p1, xa, o1), None,
                                         nsample=nsample)
    jax.block_until_ready(y2)
    assert y2.shape == (N1, in_planes)
    y2_same = symmetric_transition_up_forward(params_none, (p1, xa, o1), None,
                                              nsample=nsample, use_pallas=False)
    assert jnp.allclose(y2, y2_same, atol=2e-3, rtol=2e-3), \
        float(jnp.max(jnp.abs(y2 - y2_same)))
    y2_f32 = forward_fp32_reference(params_none, (p1, xa, o1), None,
                                    nsample=nsample)
    assert jnp.allclose(y2, y2_f32, atol=1e-1, rtol=1e-1), \
        float(jnp.max(jnp.abs(y2 - y2_f32)))

    print("KERNEL_OK")
</pallas_src>

<mosaic_0001>
module attributes {stable_mosaic.version = 11 : i64} {
  func.func @kernel(%arg0: i32, %arg1: memref<96x3xf32, #tpu.memory_space<vmem>>, %arg2: memref<3x32xbf16, #tpu.memory_space<vmem>>, %arg3: memref<1x32xf32, #tpu.memory_space<vmem>>, %arg4: memref<96x32xf32, #tpu.memory_space<vmem>>) attributes {dimension_semantics = [#tpu.dimension_semantics<parallel>], iteration_bounds = array<i64: 2>, scalar_prefetch = 0 : i64, scratch_operands = 0 : i64, tpu.core_type = #tpu.core_type<tc>, window_params = [{transform_indices = @transform_0, window_bounds = array<i64: 96, 3>}, {pipeline_mode = #tpu.pipeline_mode<synchronous>, transform_indices = @transform_1, window_bounds = array<i64: 3, 32>}, {pipeline_mode = #tpu.pipeline_mode<synchronous>, transform_indices = @transform_2, window_bounds = array<i64: 1, 32>}, {transform_indices = @transform_3, window_bounds = array<i64: 96, 32>}]} {
    %c0 = arith.constant 0 : index
    %c0_0 = arith.constant 0 : index
    %0 = vector.load %arg1[%c0, %c0_0] : memref<96x3xf32, #tpu.memory_space<vmem>>, vector<96x3xf32>
    %c0_1 = arith.constant 0 : index
    %c0_2 = arith.constant 0 : index
    %1 = vector.load %arg2[%c0_1, %c0_2] : memref<3x32xbf16, #tpu.memory_space<vmem>>, vector<3x32xbf16>
    %c0_3 = arith.constant 0 : index
    %c0_4 = arith.constant 0 : index
    %2 = vector.load %arg3[%c0_3, %c0_4] : memref<1x32xf32, #tpu.memory_space<vmem>>, vector<1x32xf32>
    %3 = arith.truncf %0 : vector<96x3xf32> to vector<96x3xbf16>
    %cst = arith.constant dense<0.000000e+00> : vector<96x32xf32>
    %4 = tpu.matmul %3, %1, %cst {dimension_numbers = #tpu.dot_dimension_numbers<[1], [0], [0], [1], [0, 0, 1, 1], [], []>} : vector<96x3xbf16>, vector<3x32xbf16>, vector<96x32xf32> -> vector<96x32xf32>
    %5 = vector.broadcast %2 : vector<1x32xf32> to vector<96x32xf32>
    %6 = arith.addf %4, %5 : vector<96x32xf32>
    %c0_5 = arith.constant 0 : index
    %c0_6 = arith.constant 0 : index
    %7 = vector.load %arg4[%c0_5, %c0_6] : memref<96x32xf32, #tpu.memory_space<vmem>>, vector<96x32xf32>
    tpu.vector_store %arg4[%c0_5, %c0_6], %6 {strides = array<i32>} : memref<96x32xf32, #tpu.memory_space<vmem>>, vector<96x32xf32>,
    return
  }
  func.func @transform_0(%arg0: i32) -> (i32, i32) {
    %c0_i32 = arith.constant 0 : i32
    %c0_i32_0 = arith.constant 0 : i32
    return %arg0, %c0_i32 : i32, i32
  }
  func.func @transform_1(%arg0: i32) -> (i32, i32) {
    %c0_i32 = arith.constant 0 : i32
    %c0_i32_0 = arith.constant 0 : i32
    %c0_i32_1 = arith.constant 0 : i32
    return %c0_i32, %c0_i32_0 : i32, i32
  }
  func.func @transform_2(%arg0: i32) -> (i32, i32) {
    %c0_i32 = arith.constant 0 : i32
    %c0_i32_0 = arith.constant 0 : i32
    %c0_i32_1 = arith.constant 0 : i32
    return %c0_i32, %c0_i32_0 : i32, i32
  }
  func.func @transform_3(%arg0: i32) -> (i32, i32) {
    %c0_i32 = arith.constant 0 : i32
    %c0_i32_0 = arith.constant 0 : i32
    return %arg0, %c0_i32 : i32, i32
  }
}

</mosaic_0001>

<llo_original>
// kernel: tpu_custom_call.1
$region0: #{tpu_custom_call.1}
  #allocation0 [shape = 'u32[]', space=smem, size = 0x4, offset = 0x4, fixed_abs, tag = 'smem constant byte address 0x4 - core index']
  #allocation1 [shape = 'u32[72,128]{1,0:T(1,128)}', space=vmem, size = 0x9000, scoped, tag = 'internal scratch']
  %s0 = inlined_call_operand.vmem [shape: f32[192,3], index: 0, kind: input, shape index: {}]
  %s1 = inlined_call_operand.vmem [shape: bf16[3,32], index: 1, kind: input, shape index: {}]
  %s2 = inlined_call_operand.vmem [shape: f32[1,32], index: 2, kind: input, shape index: {}]
  %s3 = inlined_call_operand.vmem [shape: f32[192,32], index: 3, kind: output, shape index: {}]
  %s4 = sld [smem:[#allocation0]]
  $region45: #{tpu_custom_call.1} parent=0
    _
  %s6 = ssub.s32 1, %s4
  %s7 = scalar_select 0, %s6, %s4
  loop: start=0, step=1, limit=4
  $region2: #{tpu_custom_call.1} parent=0 // loop_pre_header
    _
  $region3: #{tpu_custom_call.1} parent=0 // loop_header
    %s9 = sphi 0, %s13
    %p10 = scmp.ge.s32.totalorder %s9, 4
    %s19 = sphi 0, %s21
    %s22 = sphi 0, %s19
    %s23 = sphi 0, %s22
    %s39 = sphi 0, %s23
    %s43 = sphi 0, %s43
    %s45 = sphi 0, %s43
    %s46 = sphi 0, %s45
    %s60 = sphi 0, %s46
    %s64 = sphi 0, %s64
    %s66 = sphi 0, %s64
    %s67 = sphi 0, %s66
    %s81 = sphi 0, %s67
    %s87 = sphi 0, %s89
    %s90 = sphi 0, %s87
    %s91 = sphi 0, %s90
    %s107 = sphi 0, %s91
  $region4: #{tpu_custom_call.1} parent=0 // loop_header_branch
    %12 = sbr.rel (%p10) target = $region8
  $region5: #{tpu_custom_call.1} parent=0 // loop_body
    %s14 = ssub.s32 %s9, 1
    %s15 = ssub.s32 %s9, 2
    %s16 = sadd.s32 %s9, 1
    %s17 = ssub.s32 %s9, %s16
    %p18 = scmp.eq.s32.totalorder %s17, 0
    %s20 = sadd.s32 %s19, 1
    %s21 = scalar_select %p18, %s19, %s20
    %p24 = pneg %p18
    %p25 = scmp.eq.s32.totalorder %s9, 1
    %p26 = por %p24, %p25
    %p27 = scmp.ne.s32.totalorder %s19, %s22
    %p28 = scmp.eq.s32.totalorder %s9, 0
    %p29 = por %p27, %p28
    %p30 = scmp.ne.s32.totalorder %s19, %s22
    %p31 = scmp.eq.s32.totalorder %s14, 1
    %p32 = por %p30, %p31
    %p33 = scmp.ne.s32.totalorder %s22, %s23
    %p34 = scmp.eq.s32.totalorder %s14, 0
    %p35 = por %p33, %p34
    %p36 = scmp.ne.s32.totalorder %s22, %s23
    %p37 = scmp.eq.s32.totalorder %s15, 1
    %p38 = por %p36, %p37
    %p40 = scmp.ne.s32.totalorder %s23, %s39
    %p41 = scmp.eq.s32.totalorder %s15, 0
    %p42 = por %p40, %p41
    %s44 = sadd.s32 %s43, 1
    %p47 = scmp.eq.s32.totalorder %s9, 1
    %p48 = scmp.ne.s32.totalorder %s43, %s45
    %p49 = scmp.eq.s32.totalorder %s9, 0
    %p50 = por %p48, %p49
    %p51 = scmp.ne.s32.totalorder %s43, %s45
    %p52 = scmp.eq.s32.totalorder %s14, 1
    %p53 = por %p51, %p52
    %p54 = scmp.ne.s32.totalorder %s45, %s46
    %p55 = scmp.eq.s32.totalorder %s14, 0
    %p56 = por %p54, %p55
    %p57 = scmp.ne.s32.totalorder %s45, %s46
    %p58 = scmp.eq.s32.totalorder %s15, 1
    %p59 = por %p57, %p58
    %p61 = scmp.ne.s32.totalorder %s46, %s60
    %p62 = scmp.eq.s32.totalorder %s15, 0
    %p63 = por %p61, %p62
    %s65 = sadd.s32 %s64, 1
    %p68 = scmp.eq.s32.totalorder %s9, 1
    %p69 = scmp.ne.s32.totalorder %s64, %s66
    %p70 = scmp.eq.s32.totalorder %s9, 0
    %p71 = por %p69, %p70
    %p72 = scmp.ne.s32.totalorder %s64, %s66
    %p73 = scmp.eq.s32.totalorder %s14, 1
    %p74 = por %p72, %p73
    %p75 = scmp.ne.s32.totalorder %s66, %s67
    %p76 = scmp.eq.s32.totalorder %s14, 0
    %p77 = por %p75, %p76
    %p78 = scmp.ne.s32.totalorder %s66, %s67
    %p79 = scmp.eq.s32.totalorder %s15, 1
    %p80 = por %p78, %p79
    %p82 = scmp.ne.s32.totalorder %s67, %s81
    %p83 = scmp.eq.s32.totalorder %s15, 0
    %p84 = por %p82, %p83
    %s85 = ssub.s32 %s9, %s16
    %p86 = scmp.eq.s32.totalorder %s85, 0
    %s88 = sadd.s32 %s87, 1
    %s89 = scalar_select %p86, %s87, %s88
    %p92 = pneg %p86
    %p93 = scmp.eq.s32.totalorder %s9, 1
    %p94 = por %p92, %p93
    %p95 = scmp.ne.s32.totalorder %s87, %s90
    %p96 = scmp.eq.s32.totalorder %s9, 0
    %p97 = por %p95, %p96
    %p98 = scmp.ne.s32.totalorder %s87, %s90
    %p99 = scmp.eq.s32.totalorder %s14, 1
    %p100 = por %p98, %p99
    %p101 = scmp.ne.s32.totalorder %s90, %s91
    %p102 = scmp.eq.s32.totalorder %s14, 0
    %p103 = por %p101, %p102
    %p104 = scmp.ne.s32.totalorder %s90, %s91
    %p105 = scmp.eq.s32.totalorder %s15, 1
    %p106 = por %p104, %p105
    %p108 = scmp.ne.s32.totalorder %s91, %s107
    %p109 = scmp.eq.s32.totalorder %s15, 0
    %p110 = por %p108, %p109
    %p111 = scmp.le.s32.totalorder 1, %s9
    %p112 = scmp.lt.s32.totalorder %s9, 3
    %p113 = pnand %p111, %p112
    %p114 = pneg %p113
    // Predicated region
    $region9: #{tpu_custom_call.1} parent=5 // pred_check
      _
    $region10: #{tpu_custom_call.1} parent=5 // pred_check_branch
      %116 = sbr.rel (%p113) target = $region12
    $region11: #{tpu_custom_call.1} parent=5 // pred_region
      %s117 = ssub.s32 %s9, 1
      // Predicated region
      $region13: #{tpu_custom_call.1} parent=11 // pred_check
        %p118 = pneg %p56
      $region14: #{tpu_custom_call.1} parent=11 // pred_check_branch
        %120 = sbr.rel (%p118) target = $region16
      $region15: #{tpu_custom_call.1} parent=11 // pred_region
        _
      $region16: #{tpu_custom_call.1} parent=11 // pred_fallthru
        _
      // Predicated region
      $region17: #{tpu_custom_call.1} parent=11 // pred_check
        %p121 = pneg %p77
      $region18: #{tpu_custom_call.1} parent=11 // pred_check_branch
        %123 = sbr.rel (%p121) target = $region20
      $region19: #{tpu_custom_call.1} parent=11 // pred_region
        _
      $region20: #{tpu_custom_call.1} parent=11 // pred_fallthru
        _
    $region12: #{tpu_custom_call.1} parent=5 // pred_fallthru
      _
    %p124 = scmp.lt.s32.totalorder %s9, 2
    // Predicated region
    $region21: #{tpu_custom_call.1} parent=5 // pred_check
      %p125 = pneg %p124
    $region22: #{tpu_custom_call.1} parent=5 // pred_check_branch
      %127 = sbr.rel (%p125) target = $region24
    $region23: #{tpu_custom_call.1} parent=5 // pred_region
      // Predicated region
      $region25: #{tpu_custom_call.1} parent=23 // pred_check
        %p128 = pneg %p29
      $region26: #{tpu_custom_call.1} parent=23 // pred_check_branch
        %130 = sbr.rel (%p128) target = $region28
      $region27: #{tpu_custom_call.1} parent=23 // pred_region
        %s131 = smul.u32 12, %s9
        %p132 = scmp.lt.s32.totalorder %s131, 23
        %s133 = scalar_select %p132, %s131, 23
        %s134 = smul.addr %s133, 8
        %s135 = scalar_lea.vmem %s0, %s134
        %s136 = smul.u32 12, %s9
      $region28: #{tpu_custom_call.1} parent=23 // pred_fallthru
        _
    $region24: #{tpu_custom_call.1} parent=5 // pred_fallthru
      _
    %p137 = scmp.le.s32.totalorder 1, %s9
    %p138 = scmp.lt.s32.totalorder %s9, 3
    %p139 = pnand %p137, %p138
    %p140 = pneg %p139
    // Predicated region
    $region29: #{tpu_custom_call.1} parent=5 // pred_check
      _
    $region30: #{tpu_custom_call.1} parent=5 // pred_check_branch
      %142 = sbr.rel (%p139) target = $region32
    $region31: #{tpu_custom_call.1} parent=5 // pred_region
      %s143 = ssub.s32 %s9, 1
      %s144 = smul.u32 12, %s14
      %p145 = scmp.lt.s32.totalorder %s144, 23
      %s146 = scalar_select %p145, %s144, 23
      %s147 = smul.addr %s146, 8
      %s148 = scalar_lea.vmem %s0, %s147
      %p149 = pneg %p35
      %p150 = pneg %p32
      %p151 = pneg %p56
      %p152 = pneg %p53
      %p153 = pneg %p77
      %p154 = pneg %p74
      %p155 = pneg %p103
      %p156 = pneg %p100
      %s157 = smul.u32 12, %s14
      %p158 = scmp.lt.s32.totalorder %s157, 23
      %s159 = scalar_select %p158, %s157, 23
      %s160 = smul.addr %s159, 8
      %s161 = scalar_lea.vmem %s3, %s160
      %s162 = smul.u32 12, %s14
      %p163 = scmp.lt.s32.totalorder %s162, 23
      %s164 = scalar_select %p163, %s162, 23
      %s165 = smul.addr %s164, 8
      %s166 = scalar_lea.vmem %s0, %s165
      %s167 = smul.u32 12, %s14
      %s168 = smul.u32 12, %s14
      %p169 = scmp.lt.s32.totalorder %s168, 23
      %s170 = scalar_select %p169, %s168, 23
      %s171 = smul.addr %s170, 8
      %s172 = scalar_lea.vmem %s3, %s171
      %s173 = smul.u32 12, %s14
      %v175 = vld [vmem:[%s166] sm:$0xff]
      %v176 = vld [vmem:[%s166 + $0x8] sm:$0xff]
      %v177 = vld [vmem:[%s166 + $0x10] sm:$0xff]
      %v178 = vld [vmem:[%s166 + $0x18] sm:$0xff]
      %v179 = vld [vmem:[%s166 + $0x20] sm:$0xff]
      %v180 = vld [vmem:[%s166 + $0x28] sm:$0xff]
      %v181 = vld [vmem:[%s166 + $0x30] sm:$0xff]
      %v182 = vld [vmem:[%s166 + $0x38] sm:$0xff]
      %v183 = vld [vmem:[%s166 + $0x40] sm:$0xff]
      %v184 = vld [vmem:[%s166 + $0x48] sm:$0xff]
      %v185 = vld [vmem:[%s166 + $0x50] sm:$0xff]
      %v186 = vld [vmem:[%s166 + $0x58] sm:$0xff]
      %v187 = vld [vmem:[%s1] sm:$0x3]
      %v188 = vld [vmem:[%s2] sm:$0x1]
      %v189 = vpack.c.bf16 %v176, %v175
      %v190 = vpack.c.bf16 %v178, %v177
      %v191 = vpack.c.bf16 %v180, %v179
      %v192 = vpack.c.bf16 %v182, %v181
      %v193 = vpack.c.bf16 %v184, %v183
      %v194 = vpack.c.bf16 %v186, %v185
      %v196 = vperm.slane %v188, 0
      %vm198 = vcmask 23552
      %v200 = vsel %vm198, %v189, 0
      %v203 = vsel %vm198, %v190, 0
      %v206 = vsel %vm198, %v191, 0
      %v209 = vsel %vm198, %v192, 0
      %v212 = vsel %vm198, %v193, 0
      %v215 = vsel %vm198, %v194, 0
      %vm217 = vcmask 1040384
      %vm218 = vcmask 1041408
      %v219 = vsel %vm217, 4294967295, 65535
      %v220 = vsel %vm218, %v219, 0
      %v222 = vand.u32 %v187, %v220
      %224 = vmatpush.bf16.msra.mxu0 0
      %225 = vmatpush.bf16.msra.mxu0 0
      %226 = vmatpush.bf16.msra.mxu0 0
      %227 = vmatpush.bf16.msra.mxu0 0
      %228 = vmatpush.bf16.msra.mxu0 0
      %229 = vmatpush.bf16.msra.mxu0 0
      %230 = vmatpush.bf16.msra.mxu0 0
      %231 = vmatpush.bf16.msra.mxu0 %v222
      %232 = vmatmul.bf16.gmra.mxu0 %v200
      %v233 = vpop.f32.mrf.mxu0
      %v234 = vadd.f32 %v196, %v233
      %v235 = vpop.f32.mrf.mxu0
      %v236 = vadd.f32 %v196, %v235
      %237 = vmatmul.bf16.gmra.mxu0 %v203
      %v238 = vpop.f32.mrf.mxu0
      %v239 = vadd.f32 %v196, %v238
      %v240 = vpop.f32.mrf.mxu0
      %v241 = vadd.f32 %v196, %v240
      %242 = vmatmul.bf16.gmra.mxu0 %v206
      %v243 = vpop.f32.mrf.mxu0
      %v244 = vadd.f32 %v196, %v243
      %v245 = vpop.f32.mrf.mxu0
      %v246 = vadd.f32 %v196, %v245
      %247 = vmatmul.bf16.gmra.mxu0 %v209
      %v248 = vpop.f32.mrf.mxu0
      %v249 = vadd.f32 %v196, %v248
      %v250 = vpop.f32.mrf.mxu0
      %v251 = vadd.f32 %v196, %v250
      %252 = vmatmul.bf16.gmra.mxu0 %v212
      %v253 = vpop.f32.mrf.mxu0
      %v254 = vadd.f32 %v196, %v253
      %v255 = vpop.f32.mrf.mxu0
      %v256 = vadd.f32 %v196, %v255
      %257 = vmatmul.bf16.gmra.mxu0 %v215
      %v258 = vpop.f32.mrf.mxu0
      %v259 = vadd.f32 %v196, %v258
      %v260 = vpop.f32.mrf.mxu0
      %v261 = vadd.f32 %v196, %v260
      %262 = vdwg.mxu0
      %vm263 = vcmask 261120
      %264 = vst.msk [vmem:[%s172] sm:$0xff] %vm263, %v234
      %265 = vst.msk [vmem:[%s172 + $0x8] sm:$0xff] %vm263, %v236
      %266 = vst.msk [vmem:[%s172 + $0x10] sm:$0xff] %vm263, %v239
      %267 = vst.msk [vmem:[%s172 + $0x18] sm:$0xff] %vm263, %v241
      %268 = vst.msk [vmem:[%s172 + $0x20] sm:$0xff] %vm263, %v244
      %269 = vst.msk [vmem:[%s172 + $0x28] sm:$0xff] %vm263, %v246
      %270 = vst.msk [vmem:[%s172 + $0x30] sm:$0xff] %vm263, %v249
      %271 = vst.msk [vmem:[%s172 + $0x38] sm:$0xff] %vm263, %v251
      %272 = vst.msk [vmem:[%s172 + $0x40] sm:$0xff] %vm263, %v254
      %273 = vst.msk [vmem:[%s172 + $0x48] sm:$0xff] %vm263, %v256
      %274 = vst.msk [vmem:[%s172 + $0x50] sm:$0xff] %vm263, %v259
      %275 = vst.msk [vmem:[%s172 + $0x58] sm:$0xff] %vm263, %v261
      %s276 = smul.u32 12, %s14
      %p277 = scmp.lt.s32.totalorder %s276, 23
      %s278 = scalar_select %p277, %s276, 23
      %s279 = smul.addr %s278, 8
      %s280 = scalar_lea.vmem %s3, %s279
      // Predicated region
      $region33: #{tpu_custom_call.1} parent=31 // pred_check
        %p281 = pneg %p100
      $region34: #{tpu_custom_call.1} parent=31 // pred_check_branch
        %283 = sbr.rel (%p281) target = $region36
      $region35: #{tpu_custom_call.1} parent=31 // pred_region
        %s284 = smul.u32 12, %s14
      $region36: #{tpu_custom_call.1} parent=31 // pred_fallthru
        _
    $region32: #{tpu_custom_call.1} parent=5 // pred_fallthru
      _
    %p285 = scmp.le.s32.totalorder 2, %s9
    // Predicated region
    $region37: #{tpu_custom_call.1} parent=5 // pred_check
      %p286 = pneg %p285
    $region38: #{tpu_custom_call.1} parent=5 // pred_check_branch
      %288 = sbr.rel (%p286) target = $region40
    $region39: #{tpu_custom_call.1} parent=5 // pred_region
      %s289 = ssub.s32 %s9, 2
      // Predicated region
      $region41: #{tpu_custom_call.1} parent=39 // pred_check
        %p290 = pneg %p106
      $region42: #{tpu_custom_call.1} parent=39 // pred_check_branch
        %292 = sbr.rel (%p290) target = $region44
      $region43: #{tpu_custom_call.1} parent=39 // pred_region
        %s293 = smul.u32 12, %s15
        %p294 = scmp.lt.s32.totalorder %s293, 23
        %s295 = scalar_select %p294, %s293, 23
        %s296 = smul.addr %s295, 8
        %s297 = scalar_lea.vmem %s3, %s296
      $region44: #{tpu_custom_call.1} parent=39 // pred_fallthru
        _
    $region40: #{tpu_custom_call.1} parent=5 // pred_fallthru
      _
  $region6: #{tpu_custom_call.1} parent=0 // loop_footer
    %s13 = sadd.s32 1, %s9
  $region7: #{tpu_custom_call.1} parent=0 // loop_footer_branch
    %8 = sbr.rel target = $region3
  $region8: #{tpu_custom_call.1} parent=0 // loop_exit
    _

</llo_original>
